<compile_context>
chip_gen: v7x
topology: tpu7x:2x2x1
jax: 0.10.0
libtpu: 0.0.40
codegen_flags: <defaults>
</compile_context>

<pallas_src>
import functools

import jax
import jax.numpy as jnp
from jax import lax
from jax.experimental import pallas as pl
from jax.experimental.pallas import tpu as pltpu


def _make_kernel(Wp, L):
    """Fused residual-block kernel for one batch slab (B images on the lane axis)."""
    # tap lane offsets on the flattened padded grid, k = dy*3 + dx
    offsets = [(dy - 1) * Wp + (dx - 1) for dy in range(3) for dx in range(3)]

    def taps(a):
        # tap_k[:, p] = a[:, p + s]  ->  circular lane roll by (-s) mod L (XLU slot).
        # Wrap-around only lands on padded-grid border / lane-tail positions, which
        # are masked / discarded downstream.
        return [a if s == 0 else pltpu.roll(a, (-s) % L, axis=1) for s in offsets]

    def kernel(x_ref, w1_ref, w2s_ref, b1_ref, bf_ref, msk_ref, o_ref):
        x = x_ref[0]                                             # (Cin_p, L) f32

        # ---- conv1 (bn1 scale folded): in-register im2col + ONE bf16 matmul ----
        col1 = jnp.concatenate(taps(x), axis=0)                  # (9*Cin_p, L) f32
        acc1 = jnp.dot(w1_ref[...], col1.astype(jnp.bfloat16),
                       preferred_element_type=jnp.float32)       # (Cout, L) f32
        # ReLU + zero the padded-grid border and lane tail: doubles as conv2 padding
        # and kills any roll-wrap contamination.
        out1 = jnp.maximum(acc1 + b1_ref[...], 0.0) * msk_ref[...]

        # ---- conv2 (bn2 folded) + fused 1x1 shortcut (bn folded): ONE bf16 matmul --
        rhs = jnp.concatenate(taps(out1) + [x], axis=0)          # (9*Cout+Cin_p, L) f32
        acc2 = jnp.dot(w2s_ref[...], rhs.astype(jnp.bfloat16),
                       preferred_element_type=jnp.float32)       # (Cout, L) f32

        # ---- residual already inside acc2; merged bn2+shortcut bias + final relu ---
        o_ref[0] = jnp.maximum(acc2 + bf_ref[...], 0.0)

    return kernel


def _fold_params(params):
    """Fold BN scales into conv weights (bf16); merge bn2 + shortcut-bn biases."""
    w1, w2, ws, s1, b1, s2, b2, ss, bs = params
    w1q = (w1 * s1).astype(jnp.bfloat16)          # (3,3,Cin,Cout)  HWIO
    w2q = (w2 * s2).astype(jnp.bfloat16)          # (3,3,Cout,Cout) HWIO
    wsq = (ws * ss).astype(jnp.bfloat16)          # (Cin,Cout)      1x1 shortcut
    return w1q, w2q, wsq, b1.astype(jnp.float32), (b2 + bs).astype(jnp.float32)


def residual_block_forward(x_nchw, params):
    """x_nchw: (N, Cin, H, W) f32.  Returns (N, Cout, H, W) f32 (NCHW, like PyTorch)."""
    N, Cin, H, W = x_nchw.shape
    w1q, w2q, wsq, b1, bfin = _fold_params(params)
    Cout = w1q.shape[-1]
    assert Cout % 8 == 0, "Cout must be a multiple of 8 for aligned im2col concat"
    Cin_p = ((Cin + 7) // 8) * 8                  # pad input channels to sublane tile

    Hp, Wp = H + 2, W + 2
    P = Hp * Wp
    Pl = ((P + 127) // 128) * 128                 # lane-dense per-image span (384 here)

    # Images per grid step: grow the lane slab (amortize per-step overhead) but keep
    # >= 2 grid steps when possible (v7x has 2 TCs) and cap the slab (v7x 64 MiB VMEM).
    max_lanes = 2048
    B = 1
    for d in range(1, N + 1):
        if N % d == 0 and d * Pl <= max_lanes and (N // d >= 2 or N < 2):
            B = d
    G = N // B
    L = B * Pl

    # ---- padded activation, channels padded to Cin_p, lane tail zero (f32) --------
    xp = jnp.pad(x_nchw, ((0, 0), (0, Cin_p - Cin), (1, 1), (1, 1))).reshape(N, Cin_p, P)
    xp = jnp.pad(xp, ((0, 0), (0, 0), (0, Pl - P)))                      # (N, Cin_p, Pl)
    xg = xp.reshape(G, B, Cin_p, Pl).transpose(0, 2, 1, 3).reshape(G, Cin_p, L)

    # ---- weight matrices: out-channels on sublanes, (tap, in-chan) on the K axis ---
    w1p = jnp.pad(w1q, ((0, 0), (0, 0), (0, Cin_p - Cin), (0, 0)))       # (3,3,Cin_p,Cout)
    w1m = jnp.transpose(w1p.reshape(9, Cin_p, Cout), (2, 0, 1)).reshape(Cout, 9 * Cin_p)
    w2m = jnp.transpose(w2q.reshape(9, Cout, Cout), (2, 0, 1)).reshape(Cout, 9 * Cout)
    wsm = jnp.transpose(jnp.pad(wsq, ((0, Cin_p - Cin), (0, 0))), (1, 0))  # (Cout, Cin_p)
    w2s = jnp.concatenate([w2m, wsm], axis=1)                            # shortcut fused on K

    # ---- interior mask over padded-grid lanes (zero on border + lane tail) ---------
    yy = lax.broadcasted_iota(jnp.int32, (Hp, Wp), 0)
    xx = lax.broadcasted_iota(jnp.int32, (Hp, Wp), 1)
    m = ((yy >= 1) & (yy <= H) & (xx >= 1) & (xx <= W)).astype(jnp.float32).reshape(P)
    m = jnp.pad(m, (0, Pl - P))
    mask = jnp.tile(m, (B,)).reshape(1, L)

    b1c = b1.reshape(Cout, 1)
    bfc = bfin.reshape(Cout, 1)

    kernel = _make_kernel(Wp, L)

    def full(a):
        return pl.BlockSpec(a.shape, lambda g, nd=a.ndim: (0,) * nd)

    out = pl.pallas_call(
        kernel,
        out_shape=jax.ShapeDtypeStruct((G, Cout, L), jnp.float32),
        grid=(G,),
        in_specs=[
            pl.BlockSpec((1, Cin_p, L), lambda g: (g, 0, 0)),   # padded activations
            full(w1m), full(w2s),                               # folded weights (DMA'd once)
            full(b1c), full(bfc), full(mask),                   # biases + border mask
        ],
        out_specs=pl.BlockSpec((1, Cout, L), lambda g: (g, 0, 0)),
        compiler_params=pltpu.CompilerParams(
            dimension_semantics=("parallel",)),                 # batch slabs -> 2 TCs on v7x
    )(xg, w1m, w2s, b1c, bfc, mask)

    # unpack the lane slab -> per-image padded grid -> crop interior -> NCHW
    out = out.reshape(G, Cout, B, Pl).transpose(0, 2, 1, 3).reshape(N, Cout, Pl)
    return out[:, :, :P].reshape(N, Cout, Hp, Wp)[:, :, 1:H + 1, 1:W + 1]


def _reference(x_nchw, params):
    """Pure-JAX NCHW reference using the same bf16-quantized folded weights/operands."""
    N, Cin, H, W = x_nchw.shape
    w1q, w2q, wsq, b1, bfin = _fold_params(params)
    Cout = w1q.shape[-1]

    xq = x_nchw.astype(jnp.bfloat16).astype(jnp.float32)
    xh = jnp.transpose(xq, (0, 2, 3, 1))                        # NHWC
    conv = functools.partial(lax.conv_general_dilated, window_strides=(1, 1),
                             dimension_numbers=('NHWC', 'HWIO', 'NHWC'),
                             precision=lax.Precision.HIGHEST)
    o = jnp.maximum(conv(xh, w1q.astype(jnp.float32),
                         padding=((1, 1), (1, 1))) + b1, 0.0)
    o = o.astype(jnp.bfloat16).astype(jnp.float32)              # kernel's bf16 conv2 operand
    o = conv(o, w2q.astype(jnp.float32), padding=((1, 1), (1, 1)))
    sc = conv(xh, wsq.astype(jnp.float32).reshape(1, 1, Cin, Cout),
              padding=((0, 0), (0, 0)))
    out = jnp.maximum(o + sc + bfin, 0.0)
    return jnp.transpose(out, (0, 3, 1, 2))                     # NCHW


if __name__ == "__main__":
    N, Cin, Cout, H, W = 2, 4, 8, 16, 16
    eps = 1e-5

    key = jax.random.PRNGKey(0)
    ks = jax.random.split(key, 16)

    # input in PyTorch NCHW convention
    x = jax.random.normal(ks[0], (N, Cin, H, W), jnp.float32)

    # conv weights (synthetic init), HWIO
    w1 = 0.2 * jax.random.normal(ks[1], (3, 3, Cin, Cout), jnp.float32)
    w2 = 0.2 * jax.random.normal(ks[2], (3, 3, Cout, Cout), jnp.float32)
    ws = 0.2 * jax.random.normal(ks[3], (Cin, Cout), jnp.float32)        # 1x1 shortcut

    def bn_fold(kg, kb, km, kv, c):
        gamma = 1.0 + 0.1 * jax.random.normal(kg, (c,), jnp.float32)
        beta = 0.1 * jax.random.normal(kb, (c,), jnp.float32)
        mean = 0.1 * jax.random.normal(km, (c,), jnp.float32)
        var = 0.5 + jnp.abs(jax.random.normal(kv, (c,), jnp.float32))
        scale = gamma * lax.rsqrt(var + eps)
        bias = beta - mean * scale
        return scale, bias

    s1, b1 = bn_fold(ks[4], ks[5], ks[6], ks[7], Cout)
    s2, b2 = bn_fold(ks[8], ks[9], ks[10], ks[11], Cout)
    ss, bs = bn_fold(ks[12], ks[13], ks[14], ks[15], Cout)

    params = (w1, w2, ws, s1, b1, s2, b2, ss, bs)

    out = jax.block_until_ready(residual_block_forward(x, params))
    ref = _reference(x, params)

    assert out.shape == (N, Cout, H, W)
    max_err = float(jnp.max(jnp.abs(out - ref)))
    # reference quantizes the same operands to bf16, so only accumulation-order noise remains
    assert jnp.allclose(out, ref, atol=1e-2, rtol=1e-2), f"max abs err {max_err}"

    print("KERNEL_OK")
</pallas_src>

<mosaic_0001>
module attributes {stable_mosaic.version = 11 : i64} {
  func.func @kernel(%arg0: i32, %arg1: memref<1x8x384xf32, #tpu.memory_space<vmem>>, %arg2: memref<8x72xbf16, #tpu.memory_space<vmem>>, %arg3: memref<8x80xbf16, #tpu.memory_space<vmem>>, %arg4: memref<8x1xf32, #tpu.memory_space<vmem>>, %arg5: memref<8x1xf32, #tpu.memory_space<vmem>>, %arg6: memref<1x384xf32, #tpu.memory_space<vmem>>, %arg7: memref<1x8x384xf32, #tpu.memory_space<vmem>>) attributes {dimension_semantics = [#tpu.dimension_semantics<parallel>], iteration_bounds = array<i64: 2>, scalar_prefetch = 0 : i64, scratch_operands = 0 : i64, tpu.core_type = #tpu.core_type<tc>, window_params = [{transform_indices = @transform_0, window_bounds = array<i64: 1, 8, 384>}, {pipeline_mode = #tpu.pipeline_mode<synchronous>, transform_indices = @transform_1, window_bounds = array<i64: 8, 72>}, {pipeline_mode = #tpu.pipeline_mode<synchronous>, transform_indices = @transform_2, window_bounds = array<i64: 8, 80>}, {pipeline_mode = #tpu.pipeline_mode<synchronous>, transform_indices = @transform_3, window_bounds = array<i64: 8, 1>}, {pipeline_mode = #tpu.pipeline_mode<synchronous>, transform_indices = @transform_4, window_bounds = array<i64: 8, 1>}, {pipeline_mode = #tpu.pipeline_mode<synchronous>, transform_indices = @transform_5, window_bounds = array<i64: 1, 384>}, {transform_indices = @transform_6, window_bounds = array<i64: 1, 8, 384>}]} {
    %c0 = arith.constant 0 : index
    %c0_0 = arith.constant 0 : index
    %c0_1 = arith.constant 0 : index
    %0 = vector.load %arg1[%c0, %c0_0, %c0_1] : memref<1x8x384xf32, #tpu.memory_space<vmem>>, vector<1x8x384xf32>
    %1 = vector.shape_cast %0 : vector<1x8x384xf32> to vector<8x384xf32>
    %c19_i32 = arith.constant 19 : i32
    %2 = tpu.dynamic_rotate %1 by %c19_i32 dim 1 : vector<8x384xf32>, i32 -> vector<8x384xf32>
    %c18_i32 = arith.constant 18 : i32
    %3 = tpu.dynamic_rotate %1 by %c18_i32 dim 1 : vector<8x384xf32>, i32 -> vector<8x384xf32>
    %c17_i32 = arith.constant 17 : i32
    %4 = tpu.dynamic_rotate %1 by %c17_i32 dim 1 : vector<8x384xf32>, i32 -> vector<8x384xf32>
    %c1_i32 = arith.constant 1 : i32
    %5 = tpu.dynamic_rotate %1 by %c1_i32 dim 1 : vector<8x384xf32>, i32 -> vector<8x384xf32>
    %c383_i32 = arith.constant 383 : i32
    %6 = tpu.dynamic_rotate %1 by %c383_i32 dim 1 : vector<8x384xf32>, i32 -> vector<8x384xf32>
    %c367_i32 = arith.constant 367 : i32
    %7 = tpu.dynamic_rotate %1 by %c367_i32 dim 1 : vector<8x384xf32>, i32 -> vector<8x384xf32>
    %c366_i32 = arith.constant 366 : i32
    %8 = tpu.dynamic_rotate %1 by %c366_i32 dim 1 : vector<8x384xf32>, i32 -> vector<8x384xf32>
    %c365_i32 = arith.constant 365 : i32
    %9 = tpu.dynamic_rotate %1 by %c365_i32 dim 1 : vector<8x384xf32>, i32 -> vector<8x384xf32>
    %10 = tpu.concatenate %2, %3, %4, %5, %1, %6, %7, %8, %9 in 0 : vector<8x384xf32>, vector<8x384xf32>, vector<8x384xf32>, vector<8x384xf32>, vector<8x384xf32>, vector<8x384xf32>, vector<8x384xf32>, vector<8x384xf32>, vector<8x384xf32> -> vector<72x384xf32>
    %c0_2 = arith.constant 0 : index
    %c0_3 = arith.constant 0 : index
    %11 = vector.load %arg2[%c0_2, %c0_3] : memref<8x72xbf16, #tpu.memory_space<vmem>>, vector<8x72xbf16>
    %12 = arith.truncf %10 : vector<72x384xf32> to vector<72x384xbf16>
    %cst = arith.constant dense<0.000000e+00> : vector<8x384xf32>
    %13 = tpu.matmul %11, %12, %cst {dimension_numbers = #tpu.dot_dimension_numbers<[1], [0], [0], [1], [0, 0, 1, 1], [], []>} : vector<8x72xbf16>, vector<72x384xbf16>, vector<8x384xf32> -> vector<8x384xf32>
    %c0_4 = arith.constant 0 : index
    %c0_5 = arith.constant 0 : index
    %14 = vector.load %arg4[%c0_4, %c0_5] : memref<8x1xf32, #tpu.memory_space<vmem>>, vector<8x1xf32>
    %15 = vector.broadcast %14 : vector<8x1xf32> to vector<8x384xf32>
    %16 = arith.addf %13, %15 : vector<8x384xf32>
    %cst_6 = arith.constant 0.000000e+00 : f32
    %17 = vector.broadcast %cst_6 : f32 to vector<8x384xf32>
    %18 = arith.maximumf %16, %17 : vector<8x384xf32>
    %c0_7 = arith.constant 0 : index
    %c0_8 = arith.constant 0 : index
    %19 = vector.load %arg6[%c0_7, %c0_8] : memref<1x384xf32, #tpu.memory_space<vmem>>, vector<1x384xf32>
    %20 = vector.broadcast %19 : vector<1x384xf32> to vector<8x384xf32>
    %21 = arith.mulf %18, %20 : vector<8x384xf32>
    %c19_i32_9 = arith.constant 19 : i32
    %22 = tpu.dynamic_rotate %21 by %c19_i32_9 dim 1 : vector<8x384xf32>, i32 -> vector<8x384xf32>
    %c18_i32_10 = arith.constant 18 : i32
    %23 = tpu.dynamic_rotate %21 by %c18_i32_10 dim 1 : vector<8x384xf32>, i32 -> vector<8x384xf32>
    %c17_i32_11 = arith.constant 17 : i32
    %24 = tpu.dynamic_rotate %21 by %c17_i32_11 dim 1 : vector<8x384xf32>, i32 -> vector<8x384xf32>
    %c1_i32_12 = arith.constant 1 : i32
    %25 = tpu.dynamic_rotate %21 by %c1_i32_12 dim 1 : vector<8x384xf32>, i32 -> vector<8x384xf32>
    %c383_i32_13 = arith.constant 383 : i32
    %26 = tpu.dynamic_rotate %21 by %c383_i32_13 dim 1 : vector<8x384xf32>, i32 -> vector<8x384xf32>
    %c367_i32_14 = arith.constant 367 : i32
    %27 = tpu.dynamic_rotate %21 by %c367_i32_14 dim 1 : vector<8x384xf32>, i32 -> vector<8x384xf32>
    %c366_i32_15 = arith.constant 366 : i32
    %28 = tpu.dynamic_rotate %21 by %c366_i32_15 dim 1 : vector<8x384xf32>, i32 -> vector<8x384xf32>
    %c365_i32_16 = arith.constant 365 : i32
    %29 = tpu.dynamic_rotate %21 by %c365_i32_16 dim 1 : vector<8x384xf32>, i32 -> vector<8x384xf32>
    %30 = tpu.concatenate %22, %23, %24, %25, %21, %26, %27, %28, %29, %1 in 0 : vector<8x384xf32>, vector<8x384xf32>, vector<8x384xf32>, vector<8x384xf32>, vector<8x384xf32>, vector<8x384xf32>, vector<8x384xf32>, vector<8x384xf32>, vector<8x384xf32>, vector<8x384xf32> -> vector<80x384xf32>
    %c0_17 = arith.constant 0 : index
    %c0_18 = arith.constant 0 : index
    %31 = vector.load %arg3[%c0_17, %c0_18] : memref<8x80xbf16, #tpu.memory_space<vmem>>, vector<8x80xbf16>
    %32 = arith.truncf %30 : vector<80x384xf32> to vector<80x384xbf16>
    %cst_19 = arith.constant dense<0.000000e+00> : vector<8x384xf32>
    %33 = tpu.matmul %31, %32, %cst_19 {dimension_numbers = #tpu.dot_dimension_numbers<[1], [0], [0], [1], [0, 0, 1, 1], [], []>} : vector<8x80xbf16>, vector<80x384xbf16>, vector<8x384xf32> -> vector<8x384xf32>
    %c0_20 = arith.constant 0 : index
    %c0_21 = arith.constant 0 : index
    %34 = vector.load %arg5[%c0_20, %c0_21] : memref<8x1xf32, #tpu.memory_space<vmem>>, vector<8x1xf32>
    %35 = vector.broadcast %34 : vector<8x1xf32> to vector<8x384xf32>
    %36 = arith.addf %33, %35 : vector<8x384xf32>
    %cst_22 = arith.constant 0.000000e+00 : f32
    %37 = vector.broadcast %cst_22 : f32 to vector<8x384xf32>
    %38 = arith.maximumf %36, %37 : vector<8x384xf32>
    %c0_23 = arith.constant 0 : index
    %c0_24 = arith.constant 0 : index
    %c0_25 = arith.constant 0 : index
    %39 = vector.load %arg7[%c0_23, %c0_24, %c0_25] : memref<1x8x384xf32, #tpu.memory_space<vmem>>, vector<1x8x384xf32>
    %40 = vector.shape_cast %39 : vector<1x8x384xf32> to vector<8x384xf32>
    %41 = vector.shape_cast %38 : vector<8x384xf32> to vector<1x8x384xf32>
    tpu.vector_store %arg7[%c0_23, %c0_24, %c0_25], %41 {strides = array<i32>} : memref<1x8x384xf32, #tpu.memory_space<vmem>>, vector<1x8x384xf32>,
    return
  }
  func.func @transform_0(%arg0: i32) -> (i32, i32, i32) {
    %c0_i32 = arith.constant 0 : i32
    %c0_i32_0 = arith.constant 0 : i32
    %c0_i32_1 = arith.constant 0 : i32
    return %arg0, %c0_i32, %c0_i32_0 : i32, i32, i32
  }
  func.func @transform_1(%arg0: i32) -> (i32, i32) {
    %c0_i32 = arith.constant 0 : i32
    %c0_i32_0 = arith.constant 0 : i32
    %c0_i32_1 = arith.constant 0 : i32
    return %c0_i32, %c0_i32_0 : i32, i32
  }
  func.func @transform_2(%arg0: i32) -> (i32, i32) {
    %c0_i32 = arith.constant 0 : i32
    %c0_i32_0 = arith.constant 0 : i32
    %c0_i32_1 = arith.constant 0 : i32
    return %c0_i32, %c0_i32_0 : i32, i32
  }
  func.func @transform_3(%arg0: i32) -> (i32, i32) {
    %c0_i32 = arith.constant 0 : i32
    %c0_i32_0 = arith.constant 0 : i32
    %c0_i32_1 = arith.constant 0 : i32
    return %c0_i32, %c0_i32_0 : i32, i32
  }
  func.func @transform_4(%arg0: i32) -> (i32, i32) {
    %c0_i32 = arith.constant 0 : i32
    %c0_i32_0 = arith.constant 0 : i32
    %c0_i32_1 = arith.constant 0 : i32
    return %c0_i32, %c0_i32_0 : i32, i32
  }
  func.func @transform_5(%arg0: i32) -> (i32, i32) {
    %c0_i32 = arith.constant 0 : i32
    %c0_i32_0 = arith.constant 0 : i32
    %c0_i32_1 = arith.constant 0 : i32
    return %c0_i32, %c0_i32_0 : i32, i32
  }
  func.func @transform_6(%arg0: i32) -> (i32, i32, i32) {
    %c0_i32 = arith.constant 0 : i32
    %c0_i32_0 = arith.constant 0 : i32
    %c0_i32_1 = arith.constant 0 : i32
    return %arg0, %c0_i32, %c0_i32_0 : i32, i32, i32
  }
}

</mosaic_0001>

<llo_original>
// kernel: tpu_custom_call.1
$region0: #{tpu_custom_call.1}
  #allocation0 [shape = 'u32[]', space=smem, size = 0x4, offset = 0x4, fixed_abs, tag = 'smem constant byte address 0x4 - core index']
  #allocation1 [shape = 'u32[144,128]{1,0:T(1,128)}', space=vmem, size = 0x12000, scoped, tag = 'internal scratch']
  %s0 = inlined_call_operand.hbm [shape: f32[2,8,384], index: 0, kind: input, shape index: {}]
  %s1 = inlined_call_operand.vmem [shape: bf16[8,72], index: 1, kind: input, shape index: {}]
  %s2 = inlined_call_operand.vmem [shape: bf16[8,80], index: 2, kind: input, shape index: {}]
  %s3 = inlined_call_operand.vmem [shape: f32[8,1], index: 3, kind: input, shape index: {}]
  %s4 = inlined_call_operand.vmem [shape: f32[8,1], index: 4, kind: input, shape index: {}]
  %s5 = inlined_call_operand.vmem [shape: f32[1,384], index: 5, kind: input, shape index: {}]
  %s6 = inlined_call_operand.hbm [shape: f32[2,8,384], index: 6, kind: output, shape index: {}]
  %s7 = sld [smem:[#allocation0]]
  $region61: #{tpu_custom_call.1} parent=0
    _
  %s9 = ssub.s32 1, %s7
  %s10 = scalar_select 0, %s9, %s7
  $region1: #{tpu_custom_call.1} parent=0
    #allocation2 [shape = 'u8[24576]{0}', space=vmem, size = 0x6000, scoped, tag = 'input window, operand 0']
    #allocation3 [shape = 's32[2]{0}', space=sflag, size = 0x8, scoped, tag = 'scoped memory for tpu_custom_call.1']
    #allocation4 [shape = 's32[2]{0}', space=sflag, size = 0x8, scoped, tag = 'scoped memory for tpu_custom_call.1']
    #allocation5 [shape = 'u8[24576]{0}', space=vmem, size = 0x6000, scoped, tag = 'output window, operand 0']
    %11 = vsyncpa [#allocation3], 0
    %s12 = scalar_lea.sflag [#allocation3], 1
    %13 = vsyncpa %s12, 0
    %14 = vsyncpa [#allocation4], 0
    %s15 = scalar_lea.sflag [#allocation4], 1
    %16 = vsyncpa %s15, 0
    loop: start=0, step=1, limit=4
    $region2: #{tpu_custom_call.1} parent=1 // loop_pre_header
      _
    $region3: #{tpu_custom_call.1} parent=1 // loop_header
      %s18 = sphi 0, %s22
      %p19 = scmp.ge.s32.totalorder %s18, 4
      %s28 = sphi 0, %s30
      %s31 = sphi 0, %s28
      %s32 = sphi 0, %s31
      %s48 = sphi 0, %s32
      %s52 = sphi 0, %s52
      %s54 = sphi 0, %s52
      %s55 = sphi 0, %s54
      %s69 = sphi 0, %s55
      %s73 = sphi 0, %s73
      %s75 = sphi 0, %s73
      %s76 = sphi 0, %s75
      %s90 = sphi 0, %s76
      %s94 = sphi 0, %s94
      %s96 = sphi 0, %s94
      %s97 = sphi 0, %s96
      %s111 = sphi 0, %s97
      %s115 = sphi 0, %s115
      %s117 = sphi 0, %s115
      %s118 = sphi 0, %s117
      %s132 = sphi 0, %s118
      %s136 = sphi 0, %s136
      %s138 = sphi 0, %s136
      %s139 = sphi 0, %s138
      %s153 = sphi 0, %s139
      %s159 = sphi 0, %s161
      %s162 = sphi 0, %s159
      %s163 = sphi 0, %s162
      %s179 = sphi 0, %s163
    $region4: #{tpu_custom_call.1} parent=1 // loop_header_branch
      %21 = sbr.rel (%p19) target = $region8
    $region5: #{tpu_custom_call.1} parent=1 // loop_body
      %s23 = ssub.s32 %s18, 1
      %s24 = ssub.s32 %s18, 2
      %s25 = sadd.s32 %s18, 1
      %s26 = ssub.s32 %s18, %s25
      %p27 = scmp.eq.s32.totalorder %s26, 0
      %s29 = sadd.s32 %s28, 1
      %s30 = scalar_select %p27, %s28, %s29
      %p33 = pneg %p27
      %p34 = scmp.eq.s32.totalorder %s18, 1
      %p35 = por %p33, %p34
      %p36 = scmp.ne.s32.totalorder %s28, %s31
      %p37 = scmp.eq.s32.totalorder %s18, 0
      %p38 = por %p36, %p37
      %p39 = scmp.ne.s32.totalorder %s28, %s31
      %p40 = scmp.eq.s32.totalorder %s23, 1
      %p41 = por %p39, %p40
      %p42 = scmp.ne.s32.totalorder %s31, %s32
      %p43 = scmp.eq.s32.totalorder %s23, 0
      %p44 = por %p42, %p43
      %p45 = scmp.ne.s32.totalorder %s31, %s32
      %p46 = scmp.eq.s32.totalorder %s24, 1
      %p47 = por %p45, %p46
      %p49 = scmp.ne.s32.totalorder %s32, %s48
      %p50 = scmp.eq.s32.totalorder %s24, 0
      %p51 = por %p49, %p50
      %s53 = sadd.s32 %s52, 1
      %p56 = scmp.eq.s32.totalorder %s18, 1
      %p57 = scmp.ne.s32.totalorder %s52, %s54
      %p58 = scmp.eq.s32.totalorder %s18, 0
      %p59 = por %p57, %p58
      %p60 = scmp.ne.s32.totalorder %s52, %s54
      %p61 = scmp.eq.s32.totalorder %s23, 1
      %p62 = por %p60, %p61
      %p63 = scmp.ne.s32.totalorder %s54, %s55
      %p64 = scmp.eq.s32.totalorder %s23, 0
      %p65 = por %p63, %p64
      %p66 = scmp.ne.s32.totalorder %s54, %s55
      %p67 = scmp.eq.s32.totalorder %s24, 1
      %p68 = por %p66, %p67
      %p70 = scmp.ne.s32.totalorder %s55, %s69
      %p71 = scmp.eq.s32.totalorder %s24, 0
      %p72 = por %p70, %p71
      %s74 = sadd.s32 %s73, 1
      %p77 = scmp.eq.s32.totalorder %s18, 1
      %p78 = scmp.ne.s32.totalorder %s73, %s75
      %p79 = scmp.eq.s32.totalorder %s18, 0
      %p80 = por %p78, %p79
      %p81 = scmp.ne.s32.totalorder %s73, %s75
      %p82 = scmp.eq.s32.totalorder %s23, 1
      %p83 = por %p81, %p82
      %p84 = scmp.ne.s32.totalorder %s75, %s76
      %p85 = scmp.eq.s32.totalorder %s23, 0
      %p86 = por %p84, %p85
      %p87 = scmp.ne.s32.totalorder %s75, %s76
      %p88 = scmp.eq.s32.totalorder %s24, 1
      %p89 = por %p87, %p88
      %p91 = scmp.ne.s32.totalorder %s76, %s90
      %p92 = scmp.eq.s32.totalorder %s24, 0
      %p93 = por %p91, %p92
      %s95 = sadd.s32 %s94, 1
      %p98 = scmp.eq.s32.totalorder %s18, 1
      %p99 = scmp.ne.s32.totalorder %s94, %s96
      %p100 = scmp.eq.s32.totalorder %s18, 0
      %p101 = por %p99, %p100
      %p102 = scmp.ne.s32.totalorder %s94, %s96
      %p103 = scmp.eq.s32.totalorder %s23, 1
      %p104 = por %p102, %p103
      %p105 = scmp.ne.s32.totalorder %s96, %s97
      %p106 = scmp.eq.s32.totalorder %s23, 0
      %p107 = por %p105, %p106
      %p108 = scmp.ne.s32.totalorder %s96, %s97
      %p109 = scmp.eq.s32.totalorder %s24, 1
      %p110 = por %p108, %p109
      %p112 = scmp.ne.s32.totalorder %s97, %s111
      %p113 = scmp.eq.s32.totalorder %s24, 0
      %p114 = por %p112, %p113
      %s116 = sadd.s32 %s115, 1
      %p119 = scmp.eq.s32.totalorder %s18, 1
      %p120 = scmp.ne.s32.totalorder %s115, %s117
      %p121 = scmp.eq.s32.totalorder %s18, 0
      %p122 = por %p120, %p121
      %p123 = scmp.ne.s32.totalorder %s115, %s117
      %p124 = scmp.eq.s32.totalorder %s23, 1
      %p125 = por %p123, %p124
      %p126 = scmp.ne.s32.totalorder %s117, %s118
      %p127 = scmp.eq.s32.totalorder %s23, 0
      %p128 = por %p126, %p127
      %p129 = scmp.ne.s32.totalorder %s117, %s118
      %p130 = scmp.eq.s32.totalorder %s24, 1
      %p131 = por %p129, %p130
      %p133 = scmp.ne.s32.totalorder %s118, %s132
      %p134 = scmp.eq.s32.totalorder %s24, 0
      %p135 = por %p133, %p134
      %s137 = sadd.s32 %s136, 1
      %p140 = scmp.eq.s32.totalorder %s18, 1
      %p141 = scmp.ne.s32.totalorder %s136, %s138
      %p142 = scmp.eq.s32.totalorder %s18, 0
      %p143 = por %p141, %p142
      %p144 = scmp.ne.s32.totalorder %s136, %s138
      %p145 = scmp.eq.s32.totalorder %s23, 1
      %p146 = por %p144, %p145
      %p147 = scmp.ne.s32.totalorder %s138, %s139
      %p148 = scmp.eq.s32.totalorder %s23, 0
      %p149 = por %p147, %p148
      %p150 = scmp.ne.s32.totalorder %s138, %s139
      %p151 = scmp.eq.s32.totalorder %s24, 1
      %p152 = por %p150, %p151
      %p154 = scmp.ne.s32.totalorder %s139, %s153
      %p155 = scmp.eq.s32.totalorder %s24, 0
      %p156 = por %p154, %p155
      %s157 = ssub.s32 %s18, %s25
      %p158 = scmp.eq.s32.totalorder %s157, 0
      %s160 = sadd.s32 %s159, 1
      %s161 = scalar_select %p158, %s159, %s160
      %p164 = pneg %p158
      %p165 = scmp.eq.s32.totalorder %s18, 1
      %p166 = por %p164, %p165
      %p167 = scmp.ne.s32.totalorder %s159, %s162
      %p168 = scmp.eq.s32.totalorder %s18, 0
      %p169 = por %p167, %p168
      %p170 = scmp.ne.s32.totalorder %s159, %s162
      %p171 = scmp.eq.s32.totalorder %s23, 1
      %p172 = por %p170, %p171
      %p173 = scmp.ne.s32.totalorder %s162, %s163
      %p174 = scmp.eq.s32.totalorder %s23, 0
      %p175 = por %p173, %p174
      %p176 = scmp.ne.s32.totalorder %s162, %s163
      %p177 = scmp.eq.s32.totalorder %s24, 1
      %p178 = por %p176, %p177
      %p180 = scmp.ne.s32.totalorder %s163, %s179
      %p181 = scmp.eq.s32.totalorder %s24, 0
      %p182 = por %p180, %p181
      %p183 = scmp.le.s32.totalorder 1, %s18
      %p184 = scmp.lt.s32.totalorder %s18, 3
      %p185 = pnand %p183, %p184
      %p186 = pneg %p185
      // Predicated region
      $region9: #{tpu_custom_call.1} parent=5 // pred_check
        _
      $region10: #{tpu_custom_call.1} parent=5 // pred_check_branch
        %188 = sbr.rel (%p185) target = $region12
      $region11: #{tpu_custom_call.1} parent=5 // pred_region
        %s189 = ssub.s32 %s18, 1
        // Predicated region
        $region13: #{tpu_custom_call.1} parent=11 // pred_check
          %p190 = pneg %p65
        $region14: #{tpu_custom_call.1} parent=11 // pred_check_branch
          %192 = sbr.rel (%p190) target = $region16
        $region15: #{tpu_custom_call.1} parent=11 // pred_region
          _
        $region16: #{tpu_custom_call.1} parent=11 // pred_fallthru
          _
        // Predicated region
        $region17: #{tpu_custom_call.1} parent=11 // pred_check
          %p193 = pneg %p86
        $region18: #{tpu_custom_call.1} parent=11 // pred_check_branch
          %195 = sbr.rel (%p193) target = $region20
        $region19: #{tpu_custom_call.1} parent=11 // pred_region
          _
        $region20: #{tpu_custom_call.1} parent=11 // pred_fallthru
          _
        // Predicated region
        $region21: #{tpu_custom_call.1} parent=11 // pred_check
          %p196 = pneg %p107
        $region22: #{tpu_custom_call.1} parent=11 // pred_check_branch
          %198 = sbr.rel (%p196) target = $region24
        $region23: #{tpu_custom_call.1} parent=11 // pred_region
          _
        $region24: #{tpu_custom_call.1} parent=11 // pred_fallthru
          _
        // Predicated region
        $region25: #{tpu_custom_call.1} parent=11 // pred_check
          %p199 = pneg %p128
        $region26: #{tpu_custom_call.1} parent=11 // pred_check_branch
          %201 = sbr.rel (%p199) target = $region28
        $region27: #{tpu_custom_call.1} parent=11 // pred_region
          _
        $region28: #{tpu_custom_call.1} parent=11 // pred_fallthru
          _
        // Predicated region
        $region29: #{tpu_custom_call.1} parent=11 // pred_check
          %p202 = pneg %p149
        $region30: #{tpu_custom_call.1} parent=11 // pred_check_branch
          %204 = sbr.rel (%p202) target = $region32
        $region31: #{tpu_custom_call.1} parent=11 // pred_region
          _
        $region32: #{tpu_custom_call.1} parent=11 // pred_fallthru
          _
      $region12: #{tpu_custom_call.1} parent=5 // pred_fallthru
        _
      %p205 = scmp.lt.s32.totalorder %s18, 2
      // Predicated region
      $region33: #{tpu_custom_call.1} parent=5 // pred_check
        %p206 = pneg %p205
      $region34: #{tpu_custom_call.1} parent=5 // pred_check_branch
        %208 = sbr.rel (%p206) target = $region36
      $region35: #{tpu_custom_call.1} parent=5 // pred_region
        // Predicated region
        $region37: #{tpu_custom_call.1} parent=35 // pred_check
          %p209 = pneg %p38
        $region38: #{tpu_custom_call.1} parent=35 // pred_check_branch
          %211 = sbr.rel (%p209) target = $region40
        $region39: #{tpu_custom_call.1} parent=35 // pred_region
          %s212 = sand.u32 %s28, 1
          %s213 = scalar_lea.sflag [#allocation3], %s212
          %s214 = sand.u32 %s28, 1
          %s215 = smul.addr %s214, 24
          %s216 = scalar_lea.vmem [#allocation2], %s215
          %s218 = ssub.s32 384, 384
          %219 = vsyncadd %s213, %s218
          %s220 = smul.addr %s18, 3
          %s221 = smul.addr %s220, 128
          %s222 = scalar_lea.hbm %s0, %s221
          %s224 = sshll.u32 %s216, 4
          %s225 = int_to_ptr.vmem [resolvable:$true] %s224
          %227 = dma.hbm_to_vmem [thread:$0]  %s222, 384, %s225, %s213
        $region40: #{tpu_custom_call.1} parent=35 // pred_fallthru
          _
      $region36: #{tpu_custom_call.1} parent=5 // pred_fallthru
        _
      %p228 = scmp.le.s32.totalorder 1, %s18
      %p229 = scmp.lt.s32.totalorder %s18, 3
      %p230 = pnand %p228, %p229
      %p231 = pneg %p230
      // Predicated region
      $region41: #{tpu_custom_call.1} parent=5 // pred_check
        _
      $region42: #{tpu_custom_call.1} parent=5 // pred_check_branch
        %233 = sbr.rel (%p230) target = $region44
      $region43: #{tpu_custom_call.1} parent=5 // pred_region
        %s234 = ssub.s32 %s18, 1
        %s235 = sand.u32 %s31, 1
        %s236 = scalar_lea.sflag [#allocation3], %s235
        %s237 = sand.u32 %s31, 1
        %s238 = smul.addr %s237, 24
        %s239 = scalar_lea.vmem [#allocation2], %s238
        // Predicated region
        $region45: #{tpu_custom_call.1} parent=43 // pred_check
          %p240 = pneg %p44
        $region46: #{tpu_custom_call.1} parent=43 // pred_check_branch
          %242 = sbr.rel (%p240) target = $region48
        $region47: #{tpu_custom_call.1} parent=43 // pred_region
          %243 = dma.done %s236, 384
        $region48: #{tpu_custom_call.1} parent=43 // pred_fallthru
          _
        %s244 = sand.u32 %s31, 1
        %s245 = scalar_lea.sflag [#allocation3], %s244
        %s246 = sand.u32 %s31, 1
        %s247 = smul.addr %s246, 24
        %s248 = scalar_lea.vmem [#allocation2], %s247
        %p249 = pneg %p44
        %p250 = pneg %p41
        %p251 = pneg %p65
        %p252 = pneg %p62
        %p253 = pneg %p86
        %p254 = pneg %p83
        %p255 = pneg %p107
        %p256 = pneg %p104
        %p257 = pneg %p128
        %p258 = pneg %p125
        %p259 = pneg %p149
        %p260 = pneg %p146
        %p261 = pneg %p175
        %p262 = pneg %p172
        %s263 = sand.u32 %s162, 1
        %s264 = scalar_lea.sflag [#allocation4], %s263
        %s265 = sand.u32 %s162, 1
        %s266 = smul.addr %s265, 24
        %s267 = scalar_lea.vmem [#allocation5], %s266
        %v269 = vld [vmem:[%s239] sm:$0xff]
        %v270 = vld [vmem:[%s239 + $0x8] sm:$0xff]
        %v271 = vld [vmem:[%s239 + $0x10] sm:$0xff]
        %272 = vrot.lane.b32.xlu0 %v269, 19
        %v273 = vpop.permute.xlu0 %272
        %274 = vrot.lane.b32.xlu0 %v270, 19
        %v275 = vpop.permute.xlu0 %274
        %276 = vrot.lane.b32.xlu0 %v271, 19
        %v277 = vpop.permute.xlu0 %276
        %v278 = vlaneseq
        %v279 = vand.u32 %v278, 127
        %vm280 = vcmp.lt.s32.totalorder %v279, 19
        %v281 = vsel %vm280, %v275, %v277
        %v282 = vsel %vm280, %v273, %v275
        %v283 = vsel %vm280, %v277, %v273
        %284 = vrot.lane.b32.xlu0 %v269, 18
        %v285 = vpop.permute.xlu0 %284
        %286 = vrot.lane.b32.xlu0 %v270, 18
        %v287 = vpop.permute.xlu0 %286
        %288 = vrot.lane.b32.xlu0 %v271, 18
        %v289 = vpop.permute.xlu0 %288
        %vm290 = vcmp.lt.s32.totalorder %v279, 18
        %v291 = vsel %vm290, %v287, %v289
        %v292 = vsel %vm290, %v285, %v287
        %v293 = vsel %vm290, %v289, %v285
        %294 = vrot.lane.b32.xlu0 %v269, 17
        %v295 = vpop.permute.xlu0 %294
        %296 = vrot.lane.b32.xlu0 %v270, 17
        %v297 = vpop.permute.xlu0 %296
        %298 = vrot.lane.b32.xlu0 %v271, 17
        %v299 = vpop.permute.xlu0 %298
        %vm300 = vcmp.lt.s32.totalorder %v279, 17
        %v301 = vsel %vm300, %v297, %v299
        %v302 = vsel %vm300, %v295, %v297
        %v303 = vsel %vm300, %v299, %v295
        %304 = vrot.lane.b32.xlu0 %v269, 1
        %v305 = vpop.permute.xlu0 %304
        %306 = vrot.lane.b32.xlu0 %v270, 1
        %v307 = vpop.permute.xlu0 %306
        %308 = vrot.lane.b32.xlu0 %v271, 1
        %v309 = vpop.permute.xlu0 %308
        %vm310 = vcmp.lt.s32.totalorder %v279, 1
        %v311 = vsel %vm310, %v307, %v309
        %v312 = vsel %vm310, %v305, %v307
        %v313 = vsel %vm310, %v309, %v305
        %314 = vrot.lane.b32.xlu0 %v269, 127
        %v315 = vpop.permute.xlu0 %314
        %316 = vrot.lane.b32.xlu0 %v270, 127
        %v317 = vpop.permute.xlu0 %316
        %318 = vrot.lane.b32.xlu0 %v271, 127
        %v319 = vpop.permute.xlu0 %318
        %vm320 = vcmp.lt.s32.totalorder %v279, 127
        %v321 = vsel %vm320, %v317, %v319
        %v322 = vsel %vm320, %v315, %v317
        %v323 = vsel %vm320, %v319, %v315
        %324 = vrot.lane.b32.xlu0 %v269, 111
        %v325 = vpop.permute.xlu0 %324
        %326 = vrot.lane.b32.xlu0 %v270, 111
        %v327 = vpop.permute.xlu0 %326
        %328 = vrot.lane.b32.xlu0 %v271, 111
        %v329 = vpop.permute.xlu0 %328
        %vm330 = vcmp.lt.s32.totalorder %v279, 111
        %v331 = vsel %vm330, %v327, %v329
        %v332 = vsel %vm330, %v325, %v327
        %v333 = vsel %vm330, %v329, %v325
        %334 = vrot.lane.b32.xlu0 %v269, 110
        %v335 = vpop.permute.xlu0 %334
        %336 = vrot.lane.b32.xlu0 %v270, 110
        %v337 = vpop.permute.xlu0 %336
        %338 = vrot.lane.b32.xlu0 %v271, 110
        %v339 = vpop.permute.xlu0 %338
        %vm340 = vcmp.lt.s32.totalorder %v279, 110
        %v341 = vsel %vm340, %v337, %v339
        %v342 = vsel %vm340, %v335, %v337
        %v343 = vsel %vm340, %v339, %v335
        %344 = vrot.lane.b32.xlu0 %v269, 109
        %v345 = vpop.permute.xlu0 %344
        %346 = vrot.lane.b32.xlu0 %v270, 109
        %v347 = vpop.permute.xlu0 %346
        %348 = vrot.lane.b32.xlu0 %v271, 109
        %v349 = vpop.permute.xlu0 %348
        %vm350 = vcmp.lt.s32.totalorder %v279, 109
        %v351 = vsel %vm350, %v347, %v349
        %v352 = vsel %vm350, %v345, %v347
        %v353 = vsel %vm350, %v349, %v345
        %v354 = vld [vmem:[%s1] sm:$0xf]
        %v355 = vpack.c.bf16 %v293, %v283
        %v356 = vpack.c.bf16 %v292, %v282
        %v357 = vpack.c.bf16 %v291, %v281
        %v358 = vpack.c.bf16 %v313, %v303
        %v359 = vpack.c.bf16 %v312, %v302
        %v360 = vpack.c.bf16 %v311, %v301
        %v361 = vpack.c.bf16 %v322, %v269
        %v362 = vpack.c.bf16 %v321, %v270
        %v363 = vpack.c.bf16 %v323, %v271
        %v364 = vpack.c.bf16 %v342, %v332
        %v365 = vpack.c.bf16 %v341, %v331
        %v366 = vpack.c.bf16 %v343, %v333
        %v367 = vpack.c.bf16 %v352, %v352
        %v368 = vpack.c.bf16 %v351, %v351
        %v369 = vpack.c.bf16 %v353, %v353
        %v370 = vld [vmem:[%s3] sm:$0xff]
        %372 = vset.pattern.permute.xlu0 0
        %373 = vperm.xlu0 %372, %v370
        %v374 = vpop.permute.xlu0 %373
        %vm376 = vcmask 588800
        %v378 = vsel %vm376, %v354, 0
        %vm380 = vcmask 1043456
        %v382 = vsel %vm380, %v367, 0
        %v385 = vsel %vm380, %v368, 0
        %v388 = vsel %vm380, %v369, 0
        %390 = vmatprep.subr.bf16.mxu0 %v356
        %391 = vmatpush1.bf16.msra.mxu0 %v355
        %392 = vmatprep.subr.bf16.mxu0 %v359
        %393 = vmatpush1.bf16.msra.mxu0 %v358
        %394 = vmatprep.subr.bf16.mxu0 %v362
        %395 = vmatpush1.bf16.msra.mxu0 %v361
        %396 = vmatprep.subr.bf16.mxu0 %v365
        %397 = vmatpush1.bf16.msra.mxu0 %v364
        %398 = vmatprep.subr.bf16.mxu0 %v385
        %399 = vmatpush1.bf16.msra.mxu0 %v382
        %400 = vmatprep.subr.bf16.mxu0 0
        %401 = vmatpush1.bf16.msra.mxu0 0
        %402 = vmatprep.subr.bf16.mxu0 0
        %403 = vmatpush1.bf16.msra.mxu0 0
        %404 = vmatprep.subr.bf16.mxu0 0
        %405 = vmatpush1.bf16.msra.mxu0 0
        %406 = vmatprep.subr.bf16.mxu0 0
        %407 = vmatpush1.bf16.msra.mxu0 0
        %408 = vmatprep.subr.bf16.mxu0 0
        %409 = vmatpush1.bf16.msra.mxu0 0
        %410 = vmatprep.subr.bf16.mxu0 0
        %411 = vmatpush1.bf16.msra.mxu0 0
        %412 = vmatprep.subr.bf16.mxu0 0
        %413 = vmatpush1.bf16.msra.mxu0 0
        %414 = vmatprep.subr.bf16.mxu0 0
        %415 = vmatpush1.bf16.msra.mxu0 0
        %416 = vmatprep.subr.bf16.mxu0 0
        %417 = vmatpush1.bf16.msra.mxu0 0
        %418 = vmatprep.subr.bf16.mxu0 0
        %419 = vmatpush1.bf16.msra.mxu0 0
        %420 = vmatprep.subr.bf16.mxu0 0
        %421 = vmatpush1.bf16.msra.mxu0 0
        %422 = vmatprep.mubr.bf16.mxu0 0
        %423 = vmatmul.mubr.bf16.gmra.mrb[0].mxu0 %v378
        %v424 = vpop.f32.mrb[0].mxu0
        %v425 = vadd.f32 %v374, %v424
        %v426 = vpop.f32.mrb[0].mxu0
        %v427 = vadd.f32 %v374, %v426
        %v428 = vpop.f32.mrb[0].mxu0
        %v429 = vpop.f32.mrb[0].mxu0
        %430 = vdwg.mxu0
        %431 = vmatprep.subr.bf16.mxu0 0
        %432 = vmatpush1.bf16.msra.mxu0 %v357
        %433 = vmatprep.subr.bf16.mxu0 0
        %434 = vmatpush1.bf16.msra.mxu0 %v360
        %435 = vmatprep.subr.bf16.mxu0 0
        %436 = vmatpush1.bf16.msra.mxu0 %v363
        %437 = vmatprep.subr.bf16.mxu0 0
        %438 = vmatpush1.bf16.msra.mxu0 %v366
        %439 = vmatprep.subr.bf16.mxu0 0
        %440 = vmatpush1.bf16.msra.mxu0 %v388
        %441 = vmatprep.subr.bf16.mxu0 0
        %442 = vmatpush1.bf16.msra.mxu0 0
        %443 = vmatprep.subr.bf16.mxu0 0
        %444 = vmatpush1.bf16.msra.mxu0 0
        %445 = vmatprep.subr.bf16.mxu0 0
        %446 = vmatpush1.bf16.msra.mxu0 0
        %447 = vmatprep.subr.bf16.mxu0 0
        %448 = vmatpush1.bf16.msra.mxu0 0
        %449 = vmatprep.subr.bf16.mxu0 0
        %450 = vmatpush1.bf16.msra.mxu0 0
        %451 = vmatprep.subr.bf16.mxu0 0
        %452 = vmatpush1.bf16.msra.mxu0 0
        %453 = vmatprep.subr.bf16.mxu0 0
        %454 = vmatpush1.bf16.msra.mxu0 0
        %455 = vmatprep.subr.bf16.mxu0 0
        %456 = vmatpush1.bf16.msra.mxu0 0
        %457 = vmatprep.subr.bf16.mxu0 0
        %458 = vmatpush1.bf16.msra.mxu0 0
        %459 = vmatprep.subr.bf16.mxu0 0
        %460 = vmatpush1.bf16.msra.mxu0 0
        %461 = vmatprep.subr.bf16.mxu0 0
        %462 = vmatpush1.bf16.msra.mxu0 0
        %463 = vmatprep.mubr.bf16.mxu0 0
        %464 = vmatmul.mubr.bf16.gmra.mrb[0].mxu0 %v378
        %v465 = vpop.f32.mrb[0].mxu0
        %v466 = vadd.f32 %v374, %v465
        %v467 = vpop.f32.mrb[0].mxu0
        %v468 = vpop.f32.mrb[0].mxu0
        %v469 = vpop.f32.mrb[0].mxu0
        %470 = vdwg.mxu0
        %v471 = vmax.f32 %v425, 0.0
        %v472 = vmax.f32 %v427, 0.0
        %v473 = vmax.f32 %v466, 0.0
        %v474 = vld [vmem:[%s5] sm:$0x7]
        %v476 = vlaneseq
        %v477 = vshrl.u32 %v476, 7
        %v478 = vsub.s32 0, %v477
        %v479 = vrot.slane %v474, %v478
        %v480 = vlaneseq
        %v481 = vshrl.u32 %v480, 7
        %v482 = vsub.s32 1, %v481
        %v483 = vrot.slane %v474, %v482
        %v484 = vlaneseq
        %v485 = vshrl.u32 %v484, 7
        %v486 = vsub.s32 2, %v485
        %v487 = vrot.slane %v474, %v486
        %v491 = vmul.f32 %v471, %v479
        %v492 = vmul.f32 %v472, %v483
        %v493 = vmul.f32 %v473, %v487
        %494 = vrot.lane.b32.xlu0 %v491, 19
        %v495 = vpop.permute.xlu0 %494
        %496 = vrot.lane.b32.xlu0 %v492, 19
        %v497 = vpop.permute.xlu0 %496
        %498 = vrot.lane.b32.xlu0 %v493, 19
        %v499 = vpop.permute.xlu0 %498
        %v500 = vsel %vm280, %v497, %v499
        %v501 = vsel %vm280, %v495, %v497
        %v502 = vsel %vm280, %v499, %v495
        %503 = vrot.lane.b32.xlu0 %v491, 18
        %v504 = vpop.permute.xlu0 %503
        %505 = vrot.lane.b32.xlu0 %v492, 18
        %v506 = vpop.permute.xlu0 %505
        %507 = vrot.lane.b32.xlu0 %v493, 18
        %v508 = vpop.permute.xlu0 %507
        %v509 = vsel %vm290, %v506, %v508
        %v510 = vsel %vm290, %v504, %v506
        %v511 = vsel %vm290, %v508, %v504
        %512 = vrot.lane.b32.xlu0 %v491, 17
        %v513 = vpop.permute.xlu0 %512
        %514 = vrot.lane.b32.xlu0 %v492, 17
        %v515 = vpop.permute.xlu0 %514
        %516 = vrot.lane.b32.xlu0 %v493, 17
        %v517 = vpop.permute.xlu0 %516
        %v518 = vsel %vm300, %v515, %v517
        %v519 = vsel %vm300, %v513, %v515
        %v520 = vsel %vm300, %v517, %v513
        %521 = vrot.lane.b32.xlu0 %v491, 1
        %v522 = vpop.permute.xlu0 %521
        %523 = vrot.lane.b32.xlu0 %v492, 1
        %v524 = vpop.permute.xlu0 %523
        %525 = vrot.lane.b32.xlu0 %v493, 1
        %v526 = vpop.permute.xlu0 %525
        %v527 = vsel %vm310, %v524, %v526
        %v528 = vsel %vm310, %v522, %v524
        %v529 = vsel %vm310, %v526, %v522
        %530 = vrot.lane.b32.xlu0 %v491, 127
        %v531 = vpop.permute.xlu0 %530
        %532 = vrot.lane.b32.xlu0 %v492, 127
        %v533 = vpop.permute.xlu0 %532
        %534 = vrot.lane.b32.xlu0 %v493, 127
        %v535 = vpop.permute.xlu0 %534
        %v536 = vsel %vm320, %v533, %v535
        %v537 = vsel %vm320, %v531, %v533
        %v538 = vsel %vm320, %v535, %v531
        %539 = vrot.lane.b32.xlu0 %v491, 111
        %v540 = vpop.permute.xlu0 %539
        %541 = vrot.lane.b32.xlu0 %v492, 111
        %v542 = vpop.permute.xlu0 %541
        %543 = vrot.lane.b32.xlu0 %v493, 111
        %v544 = vpop.permute.xlu0 %543
        %v545 = vsel %vm330, %v542, %v544
        %v546 = vsel %vm330, %v540, %v542
        %v547 = vsel %vm330, %v544, %v540
        %548 = vrot.lane.b32.xlu0 %v491, 110
        %v549 = vpop.permute.xlu0 %548
        %550 = vrot.lane.b32.xlu0 %v492, 110
        %v551 = vpop.permute.xlu0 %550
        %552 = vrot.lane.b32.xlu0 %v493, 110
        %v553 = vpop.permute.xlu0 %552
        %v554 = vsel %vm340, %v551, %v553
        %v555 = vsel %vm340, %v549, %v551
        %v556 = vsel %vm340, %v553, %v549
        %557 = vrot.lane.b32.xlu0 %v491, 109
        %v558 = vpop.permute.xlu0 %557
        %559 = vrot.lane.b32.xlu0 %v492, 109
        %v560 = vpop.permute.xlu0 %559
        %561 = vrot.lane.b32.xlu0 %v493, 109
        %v562 = vpop.permute.xlu0 %561
        %v563 = vsel %vm350, %v560, %v562
        %v564 = vsel %vm350, %v558, %v560
        %v565 = vsel %vm350, %v562, %v558
        %v566 = vld [vmem:[%s2] sm:$0xf]
        %v567 = vpack.c.bf16 %v511, %v502
        %v568 = vpack.c.bf16 %v510, %v501
        %v569 = vpack.c.bf16 %v509, %v500
        %v570 = vpack.c.bf16 %v529, %v520
        %v571 = vpack.c.bf16 %v528, %v519
        %v572 = vpack.c.bf16 %v527, %v518
        %v573 = vpack.c.bf16 %v537, %v491
        %v574 = vpack.c.bf16 %v536, %v492
        %v575 = vpack.c.bf16 %v538, %v493
        %v576 = vpack.c.bf16 %v555, %v546
        %v577 = vpack.c.bf16 %v554, %v545
        %v578 = vpack.c.bf16 %v556, %v547
        %v579 = vpack.c.bf16 %v269, %v564
        %v580 = vpack.c.bf16 %v270, %v563
        %v581 = vpack.c.bf16 %v271, %v565
        %v582 = vld [vmem:[%s4] sm:$0xff]
        %584 = vset.pattern.permute.xlu0 0
        %585 = vperm.xlu0 %584, %v582
        %v586 = vpop.permute.xlu0 %585
        %vm588 = vcmask 654336
        %v590 = vsel %vm588, %v566, 0
        %592 = vmatprep.subr.bf16.mxu0 %v568
        %593 = vmatpush1.bf16.msra.mxu0 %v567
        %594 = vmatprep.subr.bf16.mxu0 %v571
        %595 = vmatpush1.bf16.msra.mxu0 %v570
        %596 = vmatprep.subr.bf16.mxu0 %v574
        %597 = vmatpush1.bf16.msra.mxu0 %v573
        %598 = vmatprep.subr.bf16.mxu0 %v577
        %599 = vmatpush1.bf16.msra.mxu0 %v576
        %600 = vmatprep.subr.bf16.mxu0 %v580
        %601 = vmatpush1.bf16.msra.mxu0 %v579
        %602 = vmatprep.subr.bf16.mxu0 0
        %603 = vmatpush1.bf16.msra.mxu0 0
        %604 = vmatprep.subr.bf16.mxu0 0
        %605 = vmatpush1.bf16.msra.mxu0 0
        %606 = vmatprep.subr.bf16.mxu0 0
        %607 = vmatpush1.bf16.msra.mxu0 0
        %608 = vmatprep.subr.bf16.mxu0 0
        %609 = vmatpush1.bf16.msra.mxu0 0
        %610 = vmatprep.subr.bf16.mxu0 0
        %611 = vmatpush1.bf16.msra.mxu0 0
        %612 = vmatprep.subr.bf16.mxu0 0
        %613 = vmatpush1.bf16.msra.mxu0 0
        %614 = vmatprep.subr.bf16.mxu0 0
        %615 = vmatpush1.bf16.msra.mxu0 0
        %616 = vmatprep.subr.bf16.mxu0 0
        %617 = vmatpush1.bf16.msra.mxu0 0
        %618 = vmatprep.subr.bf16.mxu0 0
        %619 = vmatpush1.bf16.msra.mxu0 0
        %620 = vmatprep.subr.bf16.mxu0 0
        %621 = vmatpush1.bf16.msra.mxu0 0
        %622 = vmatprep.subr.bf16.mxu0 0
        %623 = vmatpush1.bf16.msra.mxu0 0
        %624 = vmatprep.mubr.bf16.mxu0 0
        %625 = vmatmul.mubr.bf16.gmra.mrb[0].mxu0 %v590
        %v626 = vpop.f32.mrb[0].mxu0
        %v627 = vadd.f32 %v586, %v626
        %v628 = vpop.f32.mrb[0].mxu0
        %v629 = vadd.f32 %v586, %v628
        %v630 = vpop.f32.mrb[0].mxu0
        %v631 = vpop.f32.mrb[0].mxu0
        %632 = vdwg.mxu0
        %633 = vmatprep.subr.bf16.mxu0 0
        %634 = vmatpush1.bf16.msra.mxu0 %v569
        %635 = vmatprep.subr.bf16.mxu0 0
        %636 = vmatpush1.bf16.msra.mxu0 %v572
        %637 = vmatprep.subr.bf16.mxu0 0
        %638 = vmatpush1.bf16.msra.mxu0 %v575
        %639 = vmatprep.subr.bf16.mxu0 0
        %640 = vmatpush1.bf16.msra.mxu0 %v578
        %641 = vmatprep.subr.bf16.mxu0 0
        %642 = vmatpush1.bf16.msra.mxu0 %v581
        %643 = vmatprep.subr.bf16.mxu0 0
        %644 = vmatpush1.bf16.msra.mxu0 0
        %645 = vmatprep.subr.bf16.mxu0 0
        %646 = vmatpush1.bf16.msra.mxu0 0
        %647 = vmatprep.subr.bf16.mxu0 0
        %648 = vmatpush1.bf16.msra.mxu0 0
        %649 = vmatprep.subr.bf16.mxu0 0
        %650 = vmatpush1.bf16.msra.mxu0 0
        %651 = vmatprep.subr.bf16.mxu0 0
        %652 = vmatpush1.bf16.msra.mxu0 0
        %653 = vmatprep.subr.bf16.mxu0 0
        %654 = vmatpush1.bf16.msra.mxu0 0
        %655 = vmatprep.subr.bf16.mxu0 0
        %656 = vmatpush1.bf16.msra.mxu0 0
        %657 = vmatprep.subr.bf16.mxu0 0
        %658 = vmatpush1.bf16.msra.mxu0 0
        %659 = vmatprep.subr.bf16.mxu0 0
        %660 = vmatpush1.bf16.msra.mxu0 0
        %661 = vmatprep.subr.bf16.mxu0 0
        %662 = vmatpush1.bf16.msra.mxu0 0
        %663 = vmatprep.subr.bf16.mxu0 0
        %664 = vmatpush1.bf16.msra.mxu0 0
        %665 = vmatprep.mubr.bf16.mxu0 0
        %666 = vmatmul.mubr.bf16.gmra.mrb[0].mxu0 %v590
        %v667 = vpop.f32.mrb[0].mxu0
        %v668 = vadd.f32 %v586, %v667
        %v669 = vpop.f32.mrb[0].mxu0
        %v670 = vpop.f32.mrb[0].mxu0
        %v671 = vpop.f32.mrb[0].mxu0
        %672 = vdwg.mxu0
        %v673 = vmax.f32 %v627, 0.0
        %v674 = vmax.f32 %v629, 0.0
        %v675 = vmax.f32 %v668, 0.0
        %676 = vst [vmem:[%s267] sm:$0xff] %v673
        %677 = vst [vmem:[%s267 + $0x8] sm:$0xff] %v674
        %678 = vst [vmem:[%s267 + $0x10] sm:$0xff] %v675
        %s679 = sand.u32 %s162, 1
        %s680 = scalar_lea.sflag [#allocation4], %s679
        %s681 = sand.u32 %s162, 1
        %s682 = smul.addr %s681, 24
        %s683 = scalar_lea.vmem [#allocation5], %s682
        // Predicated region
        $region49: #{tpu_custom_call.1} parent=43 // pred_check
          %p684 = pneg %p172
        $region50: #{tpu_custom_call.1} parent=43 // pred_check_branch
          %686 = sbr.rel (%p684) target = $region52
        $region51: #{tpu_custom_call.1} parent=43 // pred_region
          %s688 = ssub.s32 384, 384
          %689 = vsyncadd %s680, %s688
          %s690 = smul.addr %s23, 3
          %s691 = smul.addr %s690, 128
          %s692 = scalar_lea.hbm %s6, %s691
          %s694 = sshll.u32 %s683, 4
          %s695 = int_to_ptr.vmem [resolvable:$true] %s694
          %697 = dma.vmem_to_hbm [thread:$0]  %s695, 384, %s692, %s680
        $region52: #{tpu_custom_call.1} parent=43 // pred_fallthru
          _
      $region44: #{tpu_custom_call.1} parent=5 // pred_fallthru
        _
      %p698 = scmp.le.s32.totalorder 2, %s18
      // Predicated region
      $region53: #{tpu_custom_call.1} parent=5 // pred_check
        %p699 = pneg %p698
      $region54: #{tpu_custom_call.1} parent=5 // pred_check_branch
        %701 = sbr.rel (%p699) target = $region56
      $region55: #{tpu_custom_call.1} parent=5 // pred_region
        %s702 = ssub.s32 %s18, 2
        // Predicated region
        $region57: #{tpu_custom_call.1} parent=55 // pred_check
          %p703 = pneg %p178
        $region58: #{tpu_custom_call.1} parent=55 // pred_check_branch
          %705 = sbr.rel (%p703) target = $region60
        $region59: #{tpu_custom_call.1} parent=55 // pred_region
          %s706 = sand.u32 %s163, 1
          %s707 = scalar_lea.sflag [#allocation4], %s706
          %s708 = sand.u32 %s163, 1
          %s709 = smul.addr %s708, 24
          %s710 = scalar_lea.vmem [#allocation5], %s709
          %711 = dma.done %s707, 384
        $region60: #{tpu_custom_call.1} parent=55 // pred_fallthru
          _
      $region56: #{tpu_custom_call.1} parent=5 // pred_fallthru
        _
    $region6: #{tpu_custom_call.1} parent=1 // loop_footer
      %s22 = sadd.s32 1, %s18
    $region7: #{tpu_custom_call.1} parent=1 // loop_footer_branch
      %17 = sbr.rel target = $region3
    $region8: #{tpu_custom_call.1} parent=1 // loop_exit
      _
    %712 = vsyncpa [#allocation3], 1
    %s713 = scalar_lea.sflag [#allocation3], 1
    %714 = vsyncpa %s713, 1
    %715 = vsyncpa [#allocation4], 1
    %s716 = scalar_lea.sflag [#allocation4], 1
    %717 = vsyncpa %s716, 1

</llo_original>
